<compile_context>
chip_gen: v7x
topology: tpu7x:2x2x1
jax: 0.10.0
libtpu: 0.0.40
codegen_flags: <defaults>
</compile_context>

<pallas_src>
import math

import jax
import jax.numpy as jnp
from jax.experimental import pallas as pl
from jax.experimental.pallas import tpu as pltpu


def _round_up(x, m):
    return (x + m - 1) // m * m


def _infer_kernel(x_ref, wyg_ref, byg_ref, wd_ref, bd_ref, out_ref):
    # x_ref  : (TILE_N, Ep)   bf16  padded question rows
    # wyg_ref: (Ep, 2*Hp)     bf16  fused [Wy | Wg]
    # byg_ref: (1, 2*Hp)      f32   fused [by | bg]
    # wd_ref : (1, Hp)        f32   wa[:, 0] - wa[:, 1]
    # bd_ref : (1, 1)         f32   ba[0] - ba[1]
    # out_ref: (TILE_N, 128)  f32   lanes 0:2 = ques_gs, lanes 2:4 = Lambda
    hp = wd_ref.shape[-1]

    # --- fused GatedTrans projection (MXU, bf16 in / f32 accumulate) ---
    yg = jnp.dot(x_ref[...], wyg_ref[...],
                 preferred_element_type=jnp.float32) + byg_ref[...]
    y = jnp.tanh(yg[:, :hp])              # slice at the 128-lane boundary
    g = jax.nn.sigmoid(yg[:, hp:])
    e = y * g                             # (TILE_N, Hp) f32

    # --- F.normalize(p=2, dim=-1, eps=1e-12): rsqrt on the EUP ---
    sumsq = jnp.sum(e * e, axis=-1, keepdims=True)
    e = e * jax.lax.rsqrt(jnp.maximum(sumsq, 1e-24))

    # --- 2-class attention head collapsed to one logit difference ---
    # delta = l0 - l1 = e @ (wa[:,0] - wa[:,1]) + (ba0 - ba1)
    delta = jnp.sum(e * wd_ref[...], axis=-1, keepdims=True) + bd_ref[...]

    # Lambda = softmax([l0, l1], -1) = [sigmoid(delta), 1 - sigmoid(delta)]
    p0 = jax.nn.sigmoid(delta)            # (TILE_N, 1), EUP
    # ques_gs = eval-mode GumbelSoftmax = one_hot(argmax); delta >= 0 keeps the
    # torch "first max wins" tie-break (ties -> class 0).
    is0 = (delta >= 0.0).astype(jnp.float32)

    n, w = out_ref.shape
    lane = jax.lax.broadcasted_iota(jnp.int32, (n, w), 1)
    out = jnp.where(lane == 0, is0,
          jnp.where(lane == 1, 1.0 - is0,
          jnp.where(lane == 2, p0,
          jnp.where(lane == 3, 1.0 - p0, 0.0))))
    out_ref[...] = out


def infer_module_forward(ques, params, tile_n_max=512):
    """ques: (B, R, emb) f32. Returns (ques_gs, Lambda), each (B, R, 2) f32."""
    wy, by, wg, bg, wa, ba = params
    B, R, E = ques.shape
    H = wy.shape[1]
    N = B * R

    Ep = _round_up(E, 128)
    Hp = _round_up(H, 128)
    OUTW = 128                                   # lane-dense output slab width
    tile_n = min(tile_n_max, _round_up(N, 8))    # multiple of 8 sublanes
    Npad = _round_up(N, tile_n)

    # --- pack & zero-pad parameters (exact: padded lanes contribute 0) ---
    wy_p = jnp.zeros((Ep, Hp), jnp.float32).at[:E, :H].set(wy)
    wg_p = jnp.zeros((Ep, Hp), jnp.float32).at[:E, :H].set(wg)
    wyg = jnp.concatenate([wy_p, wg_p], axis=1).astype(jnp.bfloat16)

    by_p = jnp.zeros((1, Hp), jnp.float32).at[:, :H].set(by.reshape(1, H))
    bg_p = jnp.zeros((1, Hp), jnp.float32).at[:, :H].set(bg.reshape(1, H))
    byg = jnp.concatenate([by_p, bg_p], axis=1)

    wd = jnp.zeros((1, Hp), jnp.float32).at[0, :H].set(wa[:, 0] - wa[:, 1])
    bav = ba.reshape(-1)
    bd = (bav[0] - bav[1]).reshape(1, 1).astype(jnp.float32)

    # --- pad activations (bf16 halves HBM/VMEM traffic; f32 accumulate) ---
    x = jnp.zeros((Npad, Ep), jnp.bfloat16)
    x = x.at[:N, :E].set(ques.reshape(N, E).astype(jnp.bfloat16))

    out = pl.pallas_call(
        _infer_kernel,
        grid=(Npad // tile_n,),
        out_shape=jax.ShapeDtypeStruct((Npad, OUTW), jnp.float32),
        in_specs=[
            pl.BlockSpec((tile_n, Ep), lambda i: (i, 0)),      # x tiles
            pl.BlockSpec((Ep, 2 * Hp), lambda i: (0, 0)),      # fused W (resident)
            pl.BlockSpec((1, 2 * Hp), lambda i: (0, 0)),       # fused bias
            pl.BlockSpec((1, Hp), lambda i: (0, 0)),           # wa delta
            pl.BlockSpec((1, 1), lambda i: (0, 0)),            # ba delta
        ],
        out_specs=pl.BlockSpec((tile_n, OUTW), lambda i: (i, 0)),
        compiler_params=pltpu.CompilerParams(
            dimension_semantics=("parallel",),
            vmem_limit_bytes=32 * 1024 * 1024),
    )(x, wyg, byg, wd, bd)

    ques_gs = out[:N, 0:2].reshape(B, R, 2)
    Lambda = out[:N, 2:4].reshape(B, R, 2)
    return ques_gs, Lambda


def infer_module_reference(ques, params):
    """Pure-JAX f32 reference (eval mode) for correctness checking."""
    wy, by, wg, bg, wa, ba = params
    B, R, E = ques.shape
    hi = jax.lax.Precision.HIGHEST
    x = ques.reshape(-1, E)
    y = jnp.tanh(jnp.dot(x, wy, precision=hi) + by)
    g = jax.nn.sigmoid(jnp.dot(x, wg, precision=hi) + bg)
    e = y * g
    nrm = jnp.maximum(jnp.sqrt(jnp.sum(e * e, -1, keepdims=True)), 1e-12)
    e = e / nrm
    logits = jnp.dot(e, wa, precision=hi) + ba
    lam = jax.nn.softmax(logits, axis=-1)
    gs = jax.nn.one_hot(jnp.argmax(logits, axis=-1), 2, dtype=jnp.float32)
    return gs.reshape(B, R, 2), lam.reshape(B, R, 2)


def init_params(key, emb_size, lstm_size):
    """Deterministic init matching the PyTorch module:
    kaiming_uniform_ on Linear weights (fan_in, leaky_relu a=0), zero biases.
    Weights stored transposed as (in_dim, out_dim)."""
    k1, k2, k3 = jax.random.split(key, 3)

    def kaiming_t(k, fan_in, fan_out):
        bound = math.sqrt(6.0 / fan_in)
        return jax.random.uniform(k, (fan_in, fan_out), jnp.float32,
                                  -bound, bound)

    wy = kaiming_t(k1, emb_size, lstm_size)
    by = jnp.zeros((1, lstm_size), jnp.float32)
    wg = kaiming_t(k2, emb_size, lstm_size)
    bg = jnp.zeros((1, lstm_size), jnp.float32)
    wa = kaiming_t(k3, lstm_size, 2)
    ba = jnp.zeros((1, 2), jnp.float32)
    return (wy, by, wg, bg, wa, ba)


if __name__ == "__main__":
    key = jax.random.PRNGKey(0)
    kp, kx = jax.random.split(key)

    # small shapes: batch=2, num_rounds=8, emb_size=32, lstm_size=32
    B, R, EMB, LSTM = 2, 8, 32, 32

    params = init_params(kp, EMB, LSTM)
    ques = jax.random.normal(kx, (B, R, EMB), jnp.float32)

    ques_gs, Lambda = infer_module_forward(ques, params)
    jax.block_until_ready((ques_gs, Lambda))

    assert ques_gs.shape == (B, R, 2) and Lambda.shape == (B, R, 2)
    # sanity: Lambda rows sum to 1, ques_gs rows are exact one-hot
    assert bool(jnp.all(jnp.abs(jnp.sum(Lambda, -1) - 1.0) < 1e-3))
    assert bool(jnp.all(jnp.sum(ques_gs, -1) == 1.0))

    # loose numerical check vs. an f32 reference (kernel uses bf16 matmul inputs)
    gs_ref, lam_ref = infer_module_reference(ques, params)
    assert bool(jnp.all(jnp.abs(Lambda - lam_ref) < 5e-2))
    # argmax agreement checked only on confidently-separated rows (avoid ties)
    margin = jnp.abs(lam_ref[..., 0] - lam_ref[..., 1])
    agree = jnp.all(ques_gs == gs_ref, axis=-1)
    assert bool(jnp.all(jnp.where(margin > 0.2, agree, True)))

    print("KERNEL_OK")
</pallas_src>

<mosaic_0001>
module attributes {stable_mosaic.version = 11 : i64} {
  func.func @_infer_kernel(%arg0: i32, %arg1: memref<16x128xbf16, #tpu.memory_space<vmem>>, %arg2: memref<128x256xbf16, #tpu.memory_space<vmem>>, %arg3: memref<1x256xf32, #tpu.memory_space<vmem>>, %arg4: memref<1x128xf32, #tpu.memory_space<vmem>>, %arg5: memref<1x1xf32, #tpu.memory_space<vmem>>, %arg6: memref<16x128xf32, #tpu.memory_space<vmem>>) attributes {dimension_semantics = [#tpu.dimension_semantics<parallel>], iteration_bounds = array<i64: 1>, scalar_prefetch = 0 : i64, scratch_operands = 0 : i64, tpu.core_type = #tpu.core_type<tc>, window_params = [{transform_indices = @transform_0, window_bounds = array<i64: 16, 128>}, {pipeline_mode = #tpu.pipeline_mode<synchronous>, transform_indices = @transform_1, window_bounds = array<i64: 128, 256>}, {pipeline_mode = #tpu.pipeline_mode<synchronous>, transform_indices = @transform_2, window_bounds = array<i64: 1, 256>}, {pipeline_mode = #tpu.pipeline_mode<synchronous>, transform_indices = @transform_3, window_bounds = array<i64: 1, 128>}, {pipeline_mode = #tpu.pipeline_mode<synchronous>, transform_indices = @transform_4, window_bounds = array<i64: 1, 1>}, {transform_indices = @transform_5, window_bounds = array<i64: 16, 128>}]} {
    %c0 = arith.constant 0 : index
    %c0_0 = arith.constant 0 : index
    %0 = vector.load %arg1[%c0, %c0_0] : memref<16x128xbf16, #tpu.memory_space<vmem>>, vector<16x128xbf16>
    %c0_1 = arith.constant 0 : index
    %c0_2 = arith.constant 0 : index
    %1 = vector.load %arg2[%c0_1, %c0_2] : memref<128x256xbf16, #tpu.memory_space<vmem>>, vector<128x256xbf16>
    %cst = arith.constant dense<0.000000e+00> : vector<16x256xf32>
    %2 = tpu.matmul %0, %1, %cst {dimension_numbers = #tpu.dot_dimension_numbers<[1], [0], [0], [1], [0, 0, 1, 1], [], []>} : vector<16x128xbf16>, vector<128x256xbf16>, vector<16x256xf32> -> vector<16x256xf32>
    %c0_3 = arith.constant 0 : index
    %c0_4 = arith.constant 0 : index
    %3 = vector.load %arg3[%c0_3, %c0_4] : memref<1x256xf32, #tpu.memory_space<vmem>>, vector<1x256xf32>
    %4 = vector.broadcast %3 : vector<1x256xf32> to vector<16x256xf32>
    %5 = arith.addf %2, %4 : vector<16x256xf32>
    %6 = vector.extract_strided_slice %5 {offsets = [0, 0], sizes = [16, 128], strides = [1, 1]} : vector<16x256xf32> to vector<16x128xf32>
    %7 = math.tanh %6 : vector<16x128xf32>
    %8 = vector.extract_strided_slice %5 {offsets = [0, 128], sizes = [16, 128], strides = [1, 1]} : vector<16x256xf32> to vector<16x128xf32>
    %9 = arith.negf %8 : vector<16x128xf32>
    %10 = math.exp %9 : vector<16x128xf32>
    %cst_5 = arith.constant 1.000000e+00 : f32
    %11 = vector.broadcast %cst_5 : f32 to vector<16x128xf32>
    %12 = arith.addf %11, %10 : vector<16x128xf32>
    %13 = arith.divf %11, %12 : vector<16x128xf32>
    %14 = arith.mulf %7, %13 : vector<16x128xf32>
    %15 = arith.mulf %14, %14 : vector<16x128xf32>
    %cst_6 = arith.constant dense<0.000000e+00> : vector<16xf32>
    %16 = vector.multi_reduction <add>, %15, %cst_6 [1] : vector<16x128xf32> to vector<16xf32>
    %17 = vector.shape_cast %16 : vector<16xf32> to vector<16x1xf32>
    %cst_7 = arith.constant 1.000000e-24 : f32
    %18 = vector.broadcast %cst_7 : f32 to vector<16x1xf32>
    %19 = arith.maximumf %17, %18 : vector<16x1xf32>
    %20 = math.rsqrt %19 : vector<16x1xf32>
    %21 = vector.broadcast %20 : vector<16x1xf32> to vector<16x128xf32>
    %22 = arith.mulf %14, %21 : vector<16x128xf32>
    %c0_8 = arith.constant 0 : index
    %c0_9 = arith.constant 0 : index
    %23 = vector.load %arg4[%c0_8, %c0_9] : memref<1x128xf32, #tpu.memory_space<vmem>>, vector<1x128xf32>
    %24 = vector.broadcast %23 : vector<1x128xf32> to vector<16x128xf32>
    %25 = arith.mulf %22, %24 : vector<16x128xf32>
    %cst_10 = arith.constant dense<0.000000e+00> : vector<16xf32>
    %26 = vector.multi_reduction <add>, %25, %cst_10 [1] : vector<16x128xf32> to vector<16xf32>
    %27 = vector.shape_cast %26 : vector<16xf32> to vector<16x1xf32>
    %c0_11 = arith.constant 0 : index
    %c0_12 = arith.constant 0 : index
    %28 = vector.load %arg5[%c0_11, %c0_12] : memref<1x1xf32, #tpu.memory_space<vmem>>, vector<1x1xf32>
    %29 = vector.broadcast %28 : vector<1x1xf32> to vector<16x1xf32>
    %30 = arith.addf %27, %29 : vector<16x1xf32>
    %31 = arith.negf %30 : vector<16x1xf32>
    %32 = math.exp %31 : vector<16x1xf32>
    %cst_13 = arith.constant 1.000000e+00 : f32
    %33 = vector.broadcast %cst_13 : f32 to vector<16x1xf32>
    %34 = arith.addf %33, %32 : vector<16x1xf32>
    %35 = arith.divf %33, %34 : vector<16x1xf32>
    %cst_14 = arith.constant 0.000000e+00 : f32
    %36 = vector.broadcast %cst_14 : f32 to vector<16x1xf32>
    %37 = arith.cmpf oge, %30, %36 : vector<16x1xf32>
    %38 = arith.extui %37 : vector<16x1xi1> to vector<16x1xi32>
    %39 = arith.sitofp %38 : vector<16x1xi32> to vector<16x1xf32>
    %40 = tpu.iota {dimensions = array<i32: 1>} : vector<16x128xi32>
    %c0_i32 = arith.constant 0 : i32
    %41 = vector.broadcast %c0_i32 : i32 to vector<16x128xi32>
    %42 = arith.cmpi eq, %40, %41 : vector<16x128xi32>
    %c1_i32 = arith.constant 1 : i32
    %43 = vector.broadcast %c1_i32 : i32 to vector<16x128xi32>
    %44 = arith.cmpi eq, %40, %43 : vector<16x128xi32>
    %cst_15 = arith.constant 1.000000e+00 : f32
    %45 = vector.broadcast %cst_15 : f32 to vector<16x1xf32>
    %46 = arith.subf %45, %39 : vector<16x1xf32>
    %c2_i32 = arith.constant 2 : i32
    %47 = vector.broadcast %c2_i32 : i32 to vector<16x128xi32>
    %48 = arith.cmpi eq, %40, %47 : vector<16x128xi32>
    %c3_i32 = arith.constant 3 : i32
    %49 = vector.broadcast %c3_i32 : i32 to vector<16x128xi32>
    %50 = arith.cmpi eq, %40, %49 : vector<16x128xi32>
    %cst_16 = arith.constant 1.000000e+00 : f32
    %51 = vector.broadcast %cst_16 : f32 to vector<16x1xf32>
    %52 = arith.subf %51, %35 : vector<16x1xf32>
    %cst_17 = arith.constant 0.000000e+00 : f32
    %53 = vector.shape_cast %52 : vector<16x1xf32> to vector<16x1xf32>
    %54 = vector.broadcast %53 : vector<16x1xf32> to vector<16x128xf32>
    %55 = vector.broadcast %cst_17 : f32 to vector<16x128xf32>
    %56 = arith.select %50, %54, %55 : vector<16x128xi1>, vector<16x128xf32>
    %57 = vector.shape_cast %35 : vector<16x1xf32> to vector<16x1xf32>
    %58 = vector.broadcast %57 : vector<16x1xf32> to vector<16x128xf32>
    %59 = arith.select %48, %58, %56 : vector<16x128xi1>, vector<16x128xf32>
    %60 = vector.shape_cast %46 : vector<16x1xf32> to vector<16x1xf32>
    %61 = vector.broadcast %60 : vector<16x1xf32> to vector<16x128xf32>
    %62 = arith.select %44, %61, %59 : vector<16x128xi1>, vector<16x128xf32>
    %63 = vector.shape_cast %39 : vector<16x1xf32> to vector<16x1xf32>
    %64 = vector.broadcast %63 : vector<16x1xf32> to vector<16x128xf32>
    %65 = arith.select %42, %64, %62 : vector<16x128xi1>, vector<16x128xf32>
    %c0_18 = arith.constant 0 : index
    %c0_19 = arith.constant 0 : index
    %66 = vector.load %arg6[%c0_18, %c0_19] : memref<16x128xf32, #tpu.memory_space<vmem>>, vector<16x128xf32>
    tpu.vector_store %arg6[%c0_18, %c0_19], %65 {strides = array<i32>} : memref<16x128xf32, #tpu.memory_space<vmem>>, vector<16x128xf32>,
    return
  }
  func.func @transform_0(%arg0: i32) -> (i32, i32) {
    %c0_i32 = arith.constant 0 : i32
    %c0_i32_0 = arith.constant 0 : i32
    return %arg0, %c0_i32 : i32, i32
  }
  func.func @transform_1(%arg0: i32) -> (i32, i32) {
    %c0_i32 = arith.constant 0 : i32
    %c0_i32_0 = arith.constant 0 : i32
    %c0_i32_1 = arith.constant 0 : i32
    return %c0_i32, %c0_i32_0 : i32, i32
  }
  func.func @transform_2(%arg0: i32) -> (i32, i32) {
    %c0_i32 = arith.constant 0 : i32
    %c0_i32_0 = arith.constant 0 : i32
    %c0_i32_1 = arith.constant 0 : i32
    return %c0_i32, %c0_i32_0 : i32, i32
  }
  func.func @transform_3(%arg0: i32) -> (i32, i32) {
    %c0_i32 = arith.constant 0 : i32
    %c0_i32_0 = arith.constant 0 : i32
    %c0_i32_1 = arith.constant 0 : i32
    return %c0_i32, %c0_i32_0 : i32, i32
  }
  func.func @transform_4(%arg0: i32) -> (i32, i32) {
    %c0_i32 = arith.constant 0 : i32
    %c0_i32_0 = arith.constant 0 : i32
    %c0_i32_1 = arith.constant 0 : i32
    return %c0_i32, %c0_i32_0 : i32, i32
  }
  func.func @transform_5(%arg0: i32) -> (i32, i32) {
    %c0_i32 = arith.constant 0 : i32
    %c0_i32_0 = arith.constant 0 : i32
    return %arg0, %c0_i32 : i32, i32
  }
}

</mosaic_0001>

<llo_original>
// kernel: tpu_custom_call.1
$region0: #{tpu_custom_call.1}
  #allocation0 [shape = 'u32[]', space=smem, size = 0x4, offset = 0x4, fixed_abs, tag = 'smem constant byte address 0x4 - core index']
  #allocation1 [shape = 'u32[144,128]{1,0:T(1,128)}', space=vmem, size = 0x12000, scoped, tag = 'internal scratch']
  #allocation2 [shape = 'f32[1,1]{1,0:T(1,128)S(1)}', space=vmem, size = 0x200, scoped, tag = 'scoped memory for tpu_custom_call.1']
  %s0 = inlined_call_operand.hbm [shape: bf16[16,128], index: 0, kind: input, shape index: {}]
  %s1 = inlined_call_operand.hbm [shape: bf16[128,256], index: 1, kind: input, shape index: {}]
  %s2 = inlined_call_operand.vmem [shape: f32[1,256], index: 2, kind: input, shape index: {}]
  %s3 = inlined_call_operand.vmem [shape: f32[1,128], index: 3, kind: input, shape index: {}]
  %s4 = inlined_call_operand.<no memory space> [shape: f32[1,1], index: 4, kind: input, shape index: {}]
  %s5 = inlined_call_operand.hbm [shape: f32[16,128], index: 5, kind: output, shape index: {}]
  %s6 = sld [smem:[#allocation0]]
  $region38: #{tpu_custom_call.1} parent=0
    _
  %s8 = ssub.s32 1, %s6
  %s9 = scalar_select 0, %s8, %s6
  %v10 = vstv %s4
  %11 = vst [vmem:[#allocation2] sm:$0x1] %v10
  $region1: #{tpu_custom_call.1} parent=0
    #allocation3 [shape = 'u8[4096]{0}', space=vmem, size = 0x1000, scoped, tag = 'input window, operand 0, single buffered']
    #allocation4 [shape = 's32[1]{0}', space=sflag, size = 0x4, scoped, tag = 'scoped memory for tpu_custom_call.1']
    #allocation5 [shape = 's32[1]{0}', space=sflag, size = 0x4, scoped, tag = 'scoped memory for tpu_custom_call.1']
    #allocation6 [shape = 'u8[65536]{0}', space=vmem, size = 0x10000, scoped, tag = 'input window, operand 1, single buffered']
    #allocation7 [shape = 's32[1]{0}', space=sflag, size = 0x4, scoped, tag = 'scoped memory for tpu_custom_call.1']
    #allocation8 [shape = 'u8[8192]{0}', space=vmem, size = 0x2000, scoped, tag = 'output window, operand 0, single buffered']
    %12 = vsyncpa [#allocation4], 0
    %13 = vsyncpa [#allocation7], 0
    %14 = vsyncpa [#allocation5], 0
    // Predicated region
    $region2: #{tpu_custom_call.1} parent=1 // pred_check
      _
    $region3: #{tpu_custom_call.1} parent=1 // pred_check_branch
      %16 = sbr.rel (0) target = $region5
    $region4: #{tpu_custom_call.1} parent=1 // pred_region
      %s18 = ssub.s32 128, 128
      %19 = vsyncadd [#allocation4], %s18
      %s20 = sshll.u32 [#allocation3], 4
      %s21 = int_to_ptr.vmem [resolvable:$true] %s20
      %26 = dma.hbm_to_vmem [thread:$0]  %s0, 128, %s21, [#allocation4], 64, 64, 4
    $region5: #{tpu_custom_call.1} parent=1 // pred_fallthru
      _
    // Predicated region
    $region6: #{tpu_custom_call.1} parent=1 // pred_check
      _
    $region7: #{tpu_custom_call.1} parent=1 // pred_check_branch
      %28 = sbr.rel (0) target = $region9
    $region8: #{tpu_custom_call.1} parent=1 // pred_region
      %s30 = ssub.s32 2048, 2048
      %31 = vsyncadd [#allocation7], %s30
      %s32 = sshll.u32 [#allocation6], 4
      %s33 = int_to_ptr.vmem [resolvable:$true] %s32
      %38 = dma.hbm_to_vmem [thread:$0]  %s1, 2048, %s33, [#allocation7], 128, 128, 8
    $region9: #{tpu_custom_call.1} parent=1 // pred_fallthru
      _
    // Predicated region
    $region10: #{tpu_custom_call.1} parent=1 // pred_check
      _
    $region11: #{tpu_custom_call.1} parent=1 // pred_check_branch
      %40 = sbr.rel (0) target = $region13
    $region12: #{tpu_custom_call.1} parent=1 // pred_region
      _
    $region13: #{tpu_custom_call.1} parent=1 // pred_fallthru
      _
    // Predicated region
    $region14: #{tpu_custom_call.1} parent=1 // pred_check
      _
    $region15: #{tpu_custom_call.1} parent=1 // pred_check_branch
      %42 = sbr.rel (0) target = $region17
    $region16: #{tpu_custom_call.1} parent=1 // pred_region
      _
    $region17: #{tpu_custom_call.1} parent=1 // pred_fallthru
      _
    // Predicated region
    $region18: #{tpu_custom_call.1} parent=1 // pred_check
      _
    $region19: #{tpu_custom_call.1} parent=1 // pred_check_branch
      %44 = sbr.rel (0) target = $region21
    $region20: #{tpu_custom_call.1} parent=1 // pred_region
      _
    $region21: #{tpu_custom_call.1} parent=1 // pred_fallthru
      _
    // Predicated region
    $region22: #{tpu_custom_call.1} parent=1 // pred_check
      _
    $region23: #{tpu_custom_call.1} parent=1 // pred_check_branch
      %46 = sbr.rel (0) target = $region25
    $region24: #{tpu_custom_call.1} parent=1 // pred_region
      %47 = dma.done [#allocation4], 128
    $region25: #{tpu_custom_call.1} parent=1 // pred_fallthru
      _
    // Predicated region
    $region26: #{tpu_custom_call.1} parent=1 // pred_check
      _
    $region27: #{tpu_custom_call.1} parent=1 // pred_check_branch
      %49 = sbr.rel (0) target = $region29
    $region28: #{tpu_custom_call.1} parent=1 // pred_region
      %50 = dma.done [#allocation7], 2048
    $region29: #{tpu_custom_call.1} parent=1 // pred_fallthru
      _
    %v52 = vld [vmem:[#allocation3] sm:$0xf]
    %v53 = vld [vmem:[#allocation3 + $0x4] sm:$0xf]
    %v54 = vld [vmem:[#allocation6] sm:$0xff]
    %v55 = vld [vmem:[#allocation6 + $0x8] sm:$0xff]
    %v56 = vld [vmem:[#allocation6 + $0x10] sm:$0xff]
    %v57 = vld [vmem:[#allocation6 + $0x18] sm:$0xff]
    %v58 = vld [vmem:[#allocation6 + $0x20] sm:$0xff]
    %v59 = vld [vmem:[#allocation6 + $0x28] sm:$0xff]
    %v60 = vld [vmem:[#allocation6 + $0x30] sm:$0xff]
    %v61 = vld [vmem:[#allocation6 + $0x38] sm:$0xff]
    %v62 = vld [vmem:[#allocation6 + $0x40] sm:$0xff]
    %v63 = vld [vmem:[#allocation6 + $0x48] sm:$0xff]
    %v64 = vld [vmem:[#allocation6 + $0x50] sm:$0xff]
    %v65 = vld [vmem:[#allocation6 + $0x58] sm:$0xff]
    %v66 = vld [vmem:[#allocation6 + $0x60] sm:$0xff]
    %v67 = vld [vmem:[#allocation6 + $0x68] sm:$0xff]
    %v68 = vld [vmem:[#allocation6 + $0x70] sm:$0xff]
    %v69 = vld [vmem:[#allocation6 + $0x78] sm:$0xff]
    %v70 = vld [vmem:[%s2] sm:$0x3]
    %v72 = vlaneseq
    %v73 = vshrl.u32 %v72, 7
    %v74 = vsub.s32 0, %v73
    %v75 = vrot.slane %v70, %v74
    %v76 = vlaneseq
    %v77 = vshrl.u32 %v76, 7
    %v78 = vsub.s32 1, %v77
    %v79 = vrot.slane %v70, %v78
    %v84 = vunpack.c.l.b16 %v52
    %v85 = vunpack.c.l.b16 %v53
    %v86 = vpack.c.b16 %v85, %v84
    %v104 = vunpack.c.l.b16 %v54
    %v105 = vunpack.c.h.b16 %v54
    %v106 = vunpack.c.l.b16 %v55
    %v107 = vunpack.c.h.b16 %v55
    %v108 = vunpack.c.l.b16 %v56
    %v109 = vunpack.c.h.b16 %v56
    %v110 = vunpack.c.l.b16 %v57
    %v111 = vunpack.c.h.b16 %v57
    %v112 = vunpack.c.l.b16 %v58
    %v113 = vunpack.c.h.b16 %v58
    %v114 = vunpack.c.l.b16 %v59
    %v115 = vunpack.c.h.b16 %v59
    %v116 = vunpack.c.l.b16 %v60
    %v117 = vunpack.c.h.b16 %v60
    %v118 = vunpack.c.l.b16 %v61
    %v119 = vunpack.c.h.b16 %v61
    %v120 = vunpack.c.l.b16 %v62
    %v121 = vunpack.c.h.b16 %v62
    %v122 = vunpack.c.l.b16 %v63
    %v123 = vunpack.c.h.b16 %v63
    %v124 = vunpack.c.l.b16 %v64
    %v125 = vunpack.c.h.b16 %v64
    %v126 = vunpack.c.l.b16 %v65
    %v127 = vunpack.c.h.b16 %v65
    %v128 = vunpack.c.l.b16 %v66
    %v129 = vunpack.c.h.b16 %v66
    %v130 = vunpack.c.l.b16 %v67
    %v131 = vunpack.c.h.b16 %v67
    %v132 = vunpack.c.l.b16 %v68
    %v133 = vunpack.c.h.b16 %v68
    %v134 = vunpack.c.l.b16 %v69
    %v135 = vunpack.c.h.b16 %v69
    %v136 = vpack.c.b16 %v106, %v104
    %v137 = vpack.c.b16 %v107, %v105
    %v138 = vpack.c.b16 %v110, %v108
    %v139 = vpack.c.b16 %v111, %v109
    %v140 = vpack.c.b16 %v114, %v112
    %v141 = vpack.c.b16 %v115, %v113
    %v142 = vpack.c.b16 %v118, %v116
    %v143 = vpack.c.b16 %v119, %v117
    %v144 = vpack.c.b16 %v122, %v120
    %v145 = vpack.c.b16 %v123, %v121
    %v146 = vpack.c.b16 %v126, %v124
    %v147 = vpack.c.b16 %v127, %v125
    %v148 = vpack.c.b16 %v130, %v128
    %v149 = vpack.c.b16 %v131, %v129
    %v150 = vpack.c.b16 %v134, %v132
    %v151 = vpack.c.b16 %v135, %v133
    %168 = vmatprep.subr.bf16.mxu0 %v137
    %169 = vmatpush1.bf16.msra.mxu0 %v136
    %170 = vmatprep.subr.bf16.mxu0 %v139
    %171 = vmatpush1.bf16.msra.mxu0 %v138
    %172 = vmatprep.subr.bf16.mxu0 %v141
    %173 = vmatpush1.bf16.msra.mxu0 %v140
    %174 = vmatprep.subr.bf16.mxu0 %v143
    %175 = vmatpush1.bf16.msra.mxu0 %v142
    %176 = vmatprep.subr.bf16.mxu0 %v145
    %177 = vmatpush1.bf16.msra.mxu0 %v144
    %178 = vmatprep.subr.bf16.mxu0 %v147
    %179 = vmatpush1.bf16.msra.mxu0 %v146
    %180 = vmatprep.subr.bf16.mxu0 %v149
    %181 = vmatpush1.bf16.msra.mxu0 %v148
    %182 = vmatprep.subr.bf16.mxu0 %v151
    %183 = vmatpush1.bf16.msra.mxu0 %v150
    %184 = vmatprep.subr.bf16.mxu0 0
    %185 = vmatpush1.bf16.msra.mxu0 0
    %186 = vmatprep.subr.bf16.mxu0 0
    %187 = vmatpush1.bf16.msra.mxu0 0
    %188 = vmatprep.subr.bf16.mxu0 0
    %189 = vmatpush1.bf16.msra.mxu0 0
    %190 = vmatprep.subr.bf16.mxu0 0
    %191 = vmatpush1.bf16.msra.mxu0 0
    %192 = vmatprep.subr.bf16.mxu0 0
    %193 = vmatpush1.bf16.msra.mxu0 0
    %194 = vmatprep.subr.bf16.mxu0 0
    %195 = vmatpush1.bf16.msra.mxu0 0
    %196 = vmatprep.subr.bf16.mxu0 0
    %197 = vmatpush1.bf16.msra.mxu0 0
    %198 = vmatprep.subr.bf16.mxu0 0
    %199 = vmatpush1.bf16.msra.mxu0 0
    %200 = vmatprep.mubr.bf16.mxu0 0
    %201 = vmatmul.mubr.bf16.gmra.mrb[0].mxu0 %v86
    %v202 = vpop.f32.mrb[0].mxu0
    %v203 = vadd.f32 %v75, %v202
    %v204 = vpop.f32.mrb[0].mxu0
    %v205 = vadd.f32 %v79, %v204
    %v206 = vpop.f32.mrb[0].mxu0
    %v207 = vadd.f32 %v75, %v206
    %v208 = vpop.f32.mrb[0].mxu0
    %v209 = vadd.f32 %v79, %v208
    %210 = vdwg.mxu0
    %v211 = vtanh.pop %v203
    %v212 = vtanh.pop %v207
    %v213 = vxor.u32 %v205, 2147483648
    %v214 = vxor.u32 %v209, 2147483648
    %v215 = vmul.f32 %v213, 1.442695
    %v216 = vpow.pop %v215
    %v217 = vmul.f32 %v214, 1.442695
    %v218 = vpow.pop %v217
    %v219 = vadd.f32 %v216, 1.0
    %v220 = vadd.f32 %v218, 1.0
    %v221 = vrcp.pop %v219
    %v222 = vmul.f32 1.0, %v221
    %v223 = vrcp.pop %v220
    %v224 = vmul.f32 1.0, %v223
    %v225 = vmul.f32 %v211, %v222
    %v226 = vmul.f32 %v212, %v224
    %v227 = vmul.f32 %v225, %v225
    %v228 = vmul.f32 %v226, %v226
    %229 = vadd.xlane.f32.xlu0 %v227
    %v230 = vpop.xlane.xlu0 %229
    %231 = vadd.xlane.f32.xlu0 %v228
    %v232 = vpop.xlane.xlu0 %231
    %v233 = vmax.f32 %v230, 1e-24
    %v234 = vmax.f32 %v232, 1e-24
    %v235 = vrsqrt.pop %v233
    %v236 = vrsqrt.pop %v234
    %v237 = vmul.f32 %v225, %v235
    %v238 = vmul.f32 %v226, %v236
    %v239 = vld [vmem:[%s3] sm:$0x1]
    %v241 = vlaneseq
    %v242 = vshrl.u32 %v241, 7
    %v243 = vsub.s32 0, %v242
    %v244 = vrot.slane %v239, %v243
    %v246 = vmul.f32 %v237, %v244
    %v247 = vmul.f32 %v238, %v244
    %248 = vadd.xlane.f32.xlu0 %v246
    %v249 = vpop.xlane.xlu0 %248
    %250 = vadd.xlane.f32.xlu0 %v247
    %v251 = vpop.xlane.xlu0 %250
    %v252 = vld [vmem:[#allocation2] sm:$0x1]
    %v254 = vlaneseq
    %v255 = vshrl.u32 %v254, 7
    %v256 = vsub.s32 0, %v255
    %v257 = vrot.slane %v252, %v256
    %v259 = vadd.f32 %v249, %v257
    %v260 = vadd.f32 %v251, %v257
    %v261 = vxor.u32 %v259, 2147483648
    %v262 = vxor.u32 %v260, 2147483648
    %v263 = vmul.f32 %v261, 1.442695
    %v264 = vpow.pop %v263
    %v265 = vmul.f32 %v262, 1.442695
    %v266 = vpow.pop %v265
    %v267 = vadd.f32 %v264, 1.0
    %v268 = vadd.f32 %v266, 1.0
    %v269 = vrcp.pop %v267
    %v270 = vmul.f32 1.0, %v269
    %v271 = vrcp.pop %v268
    %v272 = vmul.f32 1.0, %v271
    %vm273 = vcmp.ge.f32.partialorder %v259, 0.0
    %vm274 = vcmp.ge.f32.partialorder %v260, 0.0
    %v275 = vsel %vm273, 1, 0
    %v276 = vsel %vm274, 1, 0
    %v277 = vcvt.s32.f32 %v275
    %v278 = vcvt.s32.f32 %v276
    %v279 = vlaneseq
    %v280 = vand.u32 %v279, 127
    %vm281 = vcmp.eq.s32.totalorder %v280, 0
    %vm282 = vcmp.eq.s32.totalorder %v280, 1
    %v283 = vsub.f32 1.0, %v277
    %v284 = vsub.f32 1.0, %v278
    %vm285 = vcmp.eq.s32.totalorder %v280, 2
    %vm286 = vcmp.eq.s32.totalorder %v280, 3
    %v287 = vsub.f32 1.0, %v270
    %v288 = vsub.f32 1.0, %v272
    %290 = vset.pattern.permute.xlu0 0
    %291 = vperm.xlu0 %290, %v287
    %v292 = vpop.permute.xlu0 %291
    %295 = vset.pattern.permute.xlu0 0
    %296 = vperm.xlu0 %295, %v288
    %v297 = vpop.permute.xlu0 %296
    %v299 = vsel %vm286, %v292, 0.0
    %v300 = vsel %vm286, %v297, 0.0
    %302 = vset.pattern.permute.xlu0 0
    %303 = vperm.xlu0 %302, %v270
    %v304 = vpop.permute.xlu0 %303
    %307 = vset.pattern.permute.xlu0 0
    %308 = vperm.xlu0 %307, %v272
    %v309 = vpop.permute.xlu0 %308
    %v311 = vsel %vm285, %v304, %v299
    %v312 = vsel %vm285, %v309, %v300
    %314 = vset.pattern.permute.xlu0 0
    %315 = vperm.xlu0 %314, %v283
    %v316 = vpop.permute.xlu0 %315
    %319 = vset.pattern.permute.xlu0 0
    %320 = vperm.xlu0 %319, %v284
    %v321 = vpop.permute.xlu0 %320
    %v323 = vsel %vm282, %v316, %v311
    %v324 = vsel %vm282, %v321, %v312
    %326 = vset.pattern.permute.xlu0 0
    %327 = vperm.xlu0 %326, %v277
    %v328 = vpop.permute.xlu0 %327
    %331 = vset.pattern.permute.xlu0 0
    %332 = vperm.xlu0 %331, %v278
    %v333 = vpop.permute.xlu0 %332
    %v335 = vsel %vm281, %v328, %v323
    %v336 = vsel %vm281, %v333, %v324
    %337 = vst [vmem:[#allocation8] sm:$0xff] %v335
    %338 = vst [vmem:[#allocation8 + $0x8] sm:$0xff] %v336
    // Predicated region
    $region30: #{tpu_custom_call.1} parent=1 // pred_check
      _
    $region31: #{tpu_custom_call.1} parent=1 // pred_check_branch
      %340 = sbr.rel (0) target = $region33
    $region32: #{tpu_custom_call.1} parent=1 // pred_region
      %s342 = ssub.s32 256, 256
      %343 = vsyncadd [#allocation5], %s342
      %s344 = sshll.u32 [#allocation8], 4
      %s345 = int_to_ptr.vmem [resolvable:$true] %s344
      %350 = dma.vmem_to_hbm [thread:$0]  %s345, 256, %s5, [#allocation5], 128, 128, 8
    $region33: #{tpu_custom_call.1} parent=1 // pred_fallthru
      _
    // Predicated region
    $region34: #{tpu_custom_call.1} parent=1 // pred_check
      _
    $region35: #{tpu_custom_call.1} parent=1 // pred_check_branch
      %352 = sbr.rel (0) target = $region37
    $region36: #{tpu_custom_call.1} parent=1 // pred_region
      %353 = dma.done [#allocation5], 256
    $region37: #{tpu_custom_call.1} parent=1 // pred_fallthru
      _
    %354 = vsyncpa [#allocation4], 1
    %355 = vsyncpa [#allocation7], 1
    %356 = vsyncpa [#allocation5], 1

</llo_original>
